<compile_context>
chip_gen: v7x
topology: tpu7x:2x2x1
jax: 0.10.0
libtpu: 0.0.40
codegen_flags: <defaults>
</compile_context>

<pallas_src>
import functools

import jax
import jax.numpy as jnp
from jax.experimental import pallas as pl
from jax.experimental.pallas import tpu as pltpu


def _inner_product_decoder_kernel(hd_ref, hm_ref, o_ref, *, rows_per_lane_row, d):
    # hd_ref, hm_ref: (tm, r*d) VMEM tiles; o_ref: (tm, r) VMEM tile.
    hd = hd_ref[...].astype(jnp.float32)
    hm = hm_ref[...].astype(jnp.float32)
    prod = hd * hm                                      # VPU elementwise, f32
    tm = prod.shape[0]
    r = rows_per_lane_row
    if r > 1:
        # Each 128-lane row carries r logical rows of width d: segmented
        # in-vreg reduction over the d-wide lane segments (XLU).
        s = jnp.sum(prod.reshape(tm, r, d), axis=-1)    # (tm, r)
    else:
        s = jnp.sum(prod, axis=-1, keepdims=True)       # (tm, 1)
    o_ref[...] = jax.nn.sigmoid(s).astype(o_ref.dtype)  # EUP exp + VPU


def inner_product_decoder(h_diseases, h_mirnas, *, block_rows=None, use_kernel=None):
    """sigmoid(rowwise dot(h_diseases, h_mirnas)); returns a flat (N,) array."""
    assert h_diseases.shape == h_mirnas.shape, "inputs must have the same shape"
    assert h_diseases.ndim == 2
    N, D = h_diseases.shape
    out_dtype = h_diseases.dtype

    if use_kernel is None:
        # For tiny problems the pallas_call launch + per-step overhead dominates.
        use_kernel = (N * D) >= (1 << 14)
    if not use_kernel:
        s = jnp.sum(
            h_diseases.astype(jnp.float32) * h_mirnas.astype(jnp.float32), axis=1
        )
        return jax.nn.sigmoid(s).astype(out_dtype).reshape(-1)

    # ---- lane packing: fold rows into lanes when D divides 128 --------------
    r = 128 // D if (D <= 128 and 128 % D == 0) else 1
    dp = r * D                                    # lane width seen by the kernel

    hd, hm = h_diseases, h_mirnas
    n_pad = ((N + r - 1) // r) * r
    if n_pad != N:                                # only pay the pad copy when needed
        pad = ((0, n_pad - N), (0, 0))
        hd = jnp.pad(hd, pad)
        hm = jnp.pad(hm, pad)
    R = n_pad // r
    # Contiguous row-major data -> free reshape (no data movement).
    hd_p = hd.reshape(R, dp)
    hm_p = hm.reshape(R, dp)

    # ---- row tile size -------------------------------------------------------
    if block_rows is None:
        itemsize = h_diseases.dtype.itemsize
        vmem_budget = 16 * 1024 * 1024            # 2 inputs x 2 pipeline buffers
        block_rows = vmem_budget // (4 * dp * itemsize)
        block_rows = min(8192, block_rows)
    # Full array in one block when it fits (any R allowed); otherwise a
    # sublane-aligned (multiple-of-8) tile with a masked partial last block.
    tm = R if R <= block_rows else max(8, (block_rows // 8) * 8)

    grid = (pl.cdiv(R, tm),)
    kernel = functools.partial(
        _inner_product_decoder_kernel, rows_per_lane_row=r, d=D
    )
    out2d = pl.pallas_call(
        kernel,
        out_shape=jax.ShapeDtypeStruct((R, r), out_dtype),
        grid=grid,
        in_specs=[
            pl.BlockSpec((tm, dp), lambda i: (i, 0)),
            pl.BlockSpec((tm, dp), lambda i: (i, 0)),
        ],
        out_specs=pl.BlockSpec((tm, r), lambda i: (i, 0)),
        compiler_params=pltpu.CompilerParams(
            dimension_semantics=("parallel",),     # v7x: shard grid across 2 TCs
            vmem_limit_bytes=32 * 1024 * 1024,     # raise v5e's 16 MiB scoped default
        ),
    )(hd_p, hm_p)

    # (R, r) row-major flattens back to the original pair order; drop padding.
    return out2d.reshape(-1)[:N]


if __name__ == "__main__":
    key = jax.random.PRNGKey(0)

    def ref_fn(hd, hm):
        s = jnp.sum(hd.astype(jnp.float32) * hm.astype(jnp.float32), axis=1)
        return jax.nn.sigmoid(s).astype(hd.dtype).reshape(-1)

    # Small cases covering: lane-packed (r=4) single block, lane-packed with
    # N-padding + multi-step grid + partial last block, and unpacked (128 % D != 0).
    cases = [
        (16, 32, None),     # packed, whole array in one block (matches old test)
        (2501, 32, 192),    # packed, N % r != 0, grid of 4 steps, partial last block
        (120, 48, None),    # unpacked path (D not a divisor of 128)
    ]
    for idx, (N, D, br) in enumerate(cases):
        k1, k2 = jax.random.split(jax.random.fold_in(key, idx))
        h_diseases = jax.random.normal(k1, (N, D), dtype=jnp.float32)
        h_mirnas = jax.random.normal(k2, (N, D), dtype=jnp.float32)

        out = inner_product_decoder(
            h_diseases, h_mirnas, block_rows=br, use_kernel=True
        )
        out = jax.block_until_ready(out)

        ref = ref_fn(h_diseases, h_mirnas)
        assert out.shape == (N,), (out.shape, N)
        assert jnp.allclose(out, ref, atol=1e-5, rtol=1e-5), f"mismatch on case {idx}"

    print("KERNEL_OK")
</pallas_src>

<mosaic_0001>
module attributes {stable_mosaic.version = 11 : i64} {
  func.func @_inner_product_decoder_kernel(%arg0: i32, %arg1: memref<4x128xf32, #tpu.memory_space<vmem>>, %arg2: memref<4x128xf32, #tpu.memory_space<vmem>>, %arg3: memref<4x4xf32, #tpu.memory_space<vmem>>) attributes {dimension_semantics = [#tpu.dimension_semantics<parallel>], iteration_bounds = array<i64: 1>, scalar_prefetch = 0 : i64, scratch_operands = 0 : i64, tpu.core_type = #tpu.core_type<tc>, window_params = [{transform_indices = @transform_0, window_bounds = array<i64: 4, 128>}, {transform_indices = @transform_1, window_bounds = array<i64: 4, 128>}, {transform_indices = @transform_2, window_bounds = array<i64: 4, 4>}]} {
    %c0 = arith.constant 0 : index
    %c0_0 = arith.constant 0 : index
    %0 = vector.load %arg1[%c0, %c0_0] : memref<4x128xf32, #tpu.memory_space<vmem>>, vector<4x128xf32>
    %c0_1 = arith.constant 0 : index
    %c0_2 = arith.constant 0 : index
    %1 = vector.load %arg2[%c0_1, %c0_2] : memref<4x128xf32, #tpu.memory_space<vmem>>, vector<4x128xf32>
    %2 = arith.mulf %0, %1 : vector<4x128xf32>
    %3 = vector.shape_cast %2 : vector<4x128xf32> to vector<4x4x32xf32>
    %cst = arith.constant dense<0.000000e+00> : vector<4x4xf32>
    %4 = vector.multi_reduction <add>, %3, %cst [2] : vector<4x4x32xf32> to vector<4x4xf32>
    %5 = arith.negf %4 : vector<4x4xf32>
    %6 = math.exp %5 : vector<4x4xf32>
    %cst_3 = arith.constant 1.000000e+00 : f32
    %7 = vector.broadcast %cst_3 : f32 to vector<4x4xf32>
    %8 = arith.addf %7, %6 : vector<4x4xf32>
    %9 = arith.divf %7, %8 : vector<4x4xf32>
    %c0_4 = arith.constant 0 : index
    %c0_5 = arith.constant 0 : index
    %10 = vector.load %arg3[%c0_4, %c0_5] : memref<4x4xf32, #tpu.memory_space<vmem>>, vector<4x4xf32>
    tpu.vector_store %arg3[%c0_4, %c0_5], %9 {strides = array<i32>} : memref<4x4xf32, #tpu.memory_space<vmem>>, vector<4x4xf32>,
    return
  }
  func.func @transform_0(%arg0: i32) -> (i32, i32) {
    %c0_i32 = arith.constant 0 : i32
    %c0_i32_0 = arith.constant 0 : i32
    return %arg0, %c0_i32 : i32, i32
  }
  func.func @transform_1(%arg0: i32) -> (i32, i32) {
    %c0_i32 = arith.constant 0 : i32
    %c0_i32_0 = arith.constant 0 : i32
    return %arg0, %c0_i32 : i32, i32
  }
  func.func @transform_2(%arg0: i32) -> (i32, i32) {
    %c0_i32 = arith.constant 0 : i32
    %c0_i32_0 = arith.constant 0 : i32
    return %arg0, %c0_i32 : i32, i32
  }
}

</mosaic_0001>

<llo_original>
// kernel: tpu_custom_call.1
$region0: #{tpu_custom_call.1}
  #allocation0 [shape = 'u32[]', space=smem, size = 0x4, offset = 0x4, fixed_abs, tag = 'smem constant byte address 0x4 - core index']
  #allocation1 [shape = 'u32[144,128]{1,0:T(1,128)}', space=vmem, size = 0x12000, scoped, tag = 'internal scratch']
  %s0 = inlined_call_operand.hbm [shape: f32[4,128], index: 0, kind: input, shape index: {}]
  %s1 = inlined_call_operand.hbm [shape: f32[4,128], index: 1, kind: input, shape index: {}]
  %s2 = inlined_call_operand.hbm [shape: f32[4,4], index: 2, kind: output, shape index: {}]
  %s3 = sld [smem:[#allocation0]]
  $region26: #{tpu_custom_call.1} parent=0
    _
  %s5 = ssub.s32 1, %s3
  %s6 = scalar_select 0, %s5, %s3
  $region1: #{tpu_custom_call.1} parent=0
    #allocation2 [shape = 'u8[2048]{0}', space=vmem, size = 0x800, scoped, tag = 'input window, operand 0, single buffered']
    #allocation3 [shape = 's32[1]{0}', space=sflag, size = 0x4, scoped, tag = 'scoped memory for tpu_custom_call.1']
    #allocation4 [shape = 's32[1]{0}', space=sflag, size = 0x4, scoped, tag = 'scoped memory for tpu_custom_call.1']
    #allocation5 [shape = 'u8[2048]{0}', space=vmem, size = 0x800, scoped, tag = 'input window, operand 1, single buffered']
    #allocation6 [shape = 's32[1]{0}', space=sflag, size = 0x4, scoped, tag = 'scoped memory for tpu_custom_call.1']
    #allocation7 [shape = 'u8[2048]{0}', space=vmem, size = 0x800, scoped, tag = 'output window, operand 0, single buffered']
    %7 = vsyncpa [#allocation3], 0
    %8 = vsyncpa [#allocation6], 0
    %9 = vsyncpa [#allocation4], 0
    // Predicated region
    $region2: #{tpu_custom_call.1} parent=1 // pred_check
      _
    $region3: #{tpu_custom_call.1} parent=1 // pred_check_branch
      %11 = sbr.rel (0) target = $region5
    $region4: #{tpu_custom_call.1} parent=1 // pred_region
      %s13 = ssub.s32 64, 64
      %14 = vsyncadd [#allocation3], %s13
      %s16 = sshll.u32 [#allocation2], 4
      %s17 = int_to_ptr.vmem [resolvable:$true] %s16
      %19 = dma.hbm_to_vmem [thread:$0]  %s0, 64, %s17, [#allocation3]
    $region5: #{tpu_custom_call.1} parent=1 // pred_fallthru
      _
    // Predicated region
    $region6: #{tpu_custom_call.1} parent=1 // pred_check
      _
    $region7: #{tpu_custom_call.1} parent=1 // pred_check_branch
      %21 = sbr.rel (0) target = $region9
    $region8: #{tpu_custom_call.1} parent=1 // pred_region
      %s23 = ssub.s32 64, 64
      %24 = vsyncadd [#allocation6], %s23
      %s26 = sshll.u32 [#allocation5], 4
      %s27 = int_to_ptr.vmem [resolvable:$true] %s26
      %29 = dma.hbm_to_vmem [thread:$0]  %s1, 64, %s27, [#allocation6]
    $region9: #{tpu_custom_call.1} parent=1 // pred_fallthru
      _
    // Predicated region
    $region10: #{tpu_custom_call.1} parent=1 // pred_check
      _
    $region11: #{tpu_custom_call.1} parent=1 // pred_check_branch
      %31 = sbr.rel (0) target = $region13
    $region12: #{tpu_custom_call.1} parent=1 // pred_region
      %32 = dma.done [#allocation3], 64
    $region13: #{tpu_custom_call.1} parent=1 // pred_fallthru
      _
    // Predicated region
    $region14: #{tpu_custom_call.1} parent=1 // pred_check
      _
    $region15: #{tpu_custom_call.1} parent=1 // pred_check_branch
      %34 = sbr.rel (0) target = $region17
    $region16: #{tpu_custom_call.1} parent=1 // pred_region
      %35 = dma.done [#allocation6], 64
    $region17: #{tpu_custom_call.1} parent=1 // pred_fallthru
      _
    %v36 = vld [vmem:[#allocation2] sm:$0xf]
    %v37 = vld [vmem:[#allocation5] sm:$0xf]
    %v38 = vmul.f32 %v36, %v37
    %40 = vrot.lane.b32.xlu0 %v38, 96
    %v41 = vpop.permute.xlu0 %40
    %43 = vrot.lane.b32.xlu0 %v38, 64
    %v44 = vpop.permute.xlu0 %43
    %46 = vrot.lane.b32.xlu0 %v38, 32
    %v47 = vpop.permute.xlu0 %46
    %v49 = vcombine.low %v38, %v44
    %v51 = vunpack.c.l.s4 1983009808
    %v52 = vunpack.c.0.s8 %v51
    %v53 = vlaneseq
    %v54 = vshrl.u32 %v53, 7
    %v55 = vsub.s32 %v52, %v54
    %v56 = vrot.slane %v49, %v55
    %v57 = vcombine.low %v41, %v47
    %v59 = vunpack.c.l.s4 1983009808
    %v60 = vunpack.c.0.s8 %v59
    %v61 = vlaneseq
    %v62 = vshrl.u32 %v61, 7
    %v63 = vsub.s32 %v60, %v62
    %v64 = vrot.slane %v57, %v63
    %v65 = vcombine.low %v56, %v64
    %v66 = vcombine.high %v56, %v64
    %v68 = vunpack.c.l.s4 1934713408
    %v69 = vunpack.c.0.s8 %v68
    %v70 = vlaneseq
    %v71 = vshrl.u32 %v70, 7
    %v72 = vsub.s32 %v69, %v71
    %v73 = vrot.slane %v65, %v72
    %v75 = vunpack.c.l.s4 1934713408
    %v76 = vunpack.c.0.s8 %v75
    %v77 = vlaneseq
    %v78 = vshrl.u32 %v77, 7
    %v79 = vsub.s32 %v76, %v78
    %v80 = vrot.slane %v66, %v79
    %v81 = vcombine.high %v73, 0.0
    %v82 = vcombine.high %v80, 0.0
    %vm83 = vcmask 257024
    %v84 = vsel %vm83, %v73, 0.0
    %85 = vadd.xlane.f32.xlu0 %v84
    %v86 = vpop.xlane.xlu0 %85
    %v87 = vsel %vm83, %v81, 0.0
    %88 = vadd.xlane.f32.xlu0 %v87
    %v89 = vpop.xlane.xlu0 %88
    %v90 = vsel %vm83, %v80, 0.0
    %91 = vadd.xlane.f32.xlu0 %v90
    %v92 = vpop.xlane.xlu0 %91
    %v93 = vsel %vm83, %v82, 0.0
    %94 = vadd.xlane.f32.xlu0 %v93
    %v95 = vpop.xlane.xlu0 %94
    %v96 = vxor.u32 %v86, 2147483648
    %v97 = vxor.u32 %v89, 2147483648
    %v98 = vxor.u32 %v92, 2147483648
    %v99 = vxor.u32 %v95, 2147483648
    %v100 = vmul.f32 %v96, 1.442695
    %v101 = vpow.pop %v100
    %v102 = vmul.f32 %v97, 1.442695
    %v103 = vpow.pop %v102
    %v104 = vmul.f32 %v98, 1.442695
    %v105 = vpow.pop %v104
    %v106 = vmul.f32 %v99, 1.442695
    %v107 = vpow.pop %v106
    %v108 = vadd.f32 %v101, 1.0
    %v109 = vadd.f32 %v103, 1.0
    %v110 = vadd.f32 %v105, 1.0
    %v111 = vadd.f32 %v107, 1.0
    %v112 = vrcp.pop %v108
    %v113 = vmul.f32 1.0, %v112
    %v114 = vrcp.pop %v109
    %v115 = vmul.f32 1.0, %v114
    %v116 = vrcp.pop %v110
    %v117 = vmul.f32 1.0, %v116
    %v118 = vrcp.pop %v111
    %v119 = vmul.f32 1.0, %v118
    %v124 = vlaneseq
    %v125 = vand.u32 %v124, 127
    %v126 = vlaneseq
    %v127 = vshrl.u32 %v126, 7
    %v128 = vsub.s32 %v125, %v127
    %v129 = vrot.slane %v113, %v128
    %v130 = vlaneseq
    %v131 = vshrl.u32 %v130, 7
    %v132 = vsub.s32 %v125, %v131
    %v133 = vrot.slane %v115, %v132
    %v134 = vlaneseq
    %v135 = vshrl.u32 %v134, 7
    %v136 = vsub.s32 %v125, %v135
    %v137 = vrot.slane %v117, %v136
    %v138 = vlaneseq
    %v139 = vshrl.u32 %v138, 7
    %v140 = vsub.s32 %v125, %v139
    %v141 = vrot.slane %v119, %v140
    %vm142 = vcmask 1041409
    %v143 = vsel %vm142, %v133, %v129
    %vm144 = vcmask 1042434
    %v145 = vsel %vm144, %v137, %v143
    %vm146 = vcmask 1043459
    %v147 = vsel %vm146, %v141, %v145
    %vm149 = vcmask 27648
    %150 = vst.msk [vmem:[#allocation7] sm:$0xf] %vm149, %v147
    // Predicated region
    $region18: #{tpu_custom_call.1} parent=1 // pred_check
      _
    $region19: #{tpu_custom_call.1} parent=1 // pred_check_branch
      %152 = sbr.rel (0) target = $region21
    $region20: #{tpu_custom_call.1} parent=1 // pred_region
      %s154 = ssub.s32 64, 64
      %155 = vsyncadd [#allocation4], %s154
      %s157 = sshll.u32 [#allocation7], 4
      %s158 = int_to_ptr.vmem [resolvable:$true] %s157
      %160 = dma.vmem_to_hbm [thread:$0]  %s158, 64, %s2, [#allocation4]
    $region21: #{tpu_custom_call.1} parent=1 // pred_fallthru
      _
    // Predicated region
    $region22: #{tpu_custom_call.1} parent=1 // pred_check
      _
    $region23: #{tpu_custom_call.1} parent=1 // pred_check_branch
      %162 = sbr.rel (0) target = $region25
    $region24: #{tpu_custom_call.1} parent=1 // pred_region
      %163 = dma.done [#allocation4], 64
    $region25: #{tpu_custom_call.1} parent=1 // pred_fallthru
      _
    %164 = vsyncpa [#allocation3], 1
    %165 = vsyncpa [#allocation6], 1
    %166 = vsyncpa [#allocation4], 1

</llo_original>
